<compile_context>
chip_gen: v6e
topology: v6e:2x2x1
jax: 0.10.0
libtpu: 0.0.40
codegen_flags: <defaults>
</compile_context>

<pallas_src>
import jax
import jax.numpy as jnp
from jax.experimental import pallas as pl
from jax.experimental.pallas import tpu as pltpu


def _ceil_div(a: int, b: int) -> int:
    return -(-a // b)


def _divisors(n: int):
    ds = set()
    i = 1
    while i * i <= n:
        if n % i == 0:
            ds.add(i)
            ds.add(n // i)
        i += 1
    return sorted(ds)


def _choose_tb(num_planes: int, cap_planes: int, subl: int) -> int:
    """Pick the per-step plane-batch size TB.

    Preference order:
      (a) a divisor of P that is a multiple of the sublane tile and leaves >= 2
          grid steps (legal block shape, zero OOB tail traffic, both v7x TCs fed);
      (b) same without the >=2-step requirement;
      (c) no friendly divisor: sublane-aligned block with >= 2 grid steps and a
          small OOB tail (tail-block reads are fetched-and-dropped -> minor waste);
      (d) tiny plane count: the whole plane axis as one full-dim block (always a
          legal block shape).
    """
    P = num_planes
    cap = max(1, min(cap_planes, P))
    good = [d for d in _divisors(P) if d % subl == 0 and d <= cap]
    if good:
        two_step = [d for d in good if P // d >= 2]
        return max(two_step) if two_step else max(good)
    if P >= 2 * subl and cap >= subl:
        n_steps = max(2, _ceil_div(P, cap))
        tb = _ceil_div(_ceil_div(P, n_steps), subl) * subl
        return max(subl, min(tb, (cap // subl) * subl))
    if P <= cap:
        return P
    # Even `subl` planes blow the budget (huge images).
    # TODO(synk): add an H-row tiling grid axis for very large planes so a single
    # plane pair never has to fit in VMEM (matters on v7x's 64 MiB VMEM).
    return min(P, subl)


def _make_pad_kernel(TB, H, W, Ho, Wo, top, bottom, left, right):
    H_W = H * W
    Ho_Wo = Ho * Wo

    def pad_kernel(x_ref, o_ref):
        # x_ref: (TB, H*W)   flat input planes  (lane-dense rows)
        # o_ref: (TB, Ho*Wo) flat output planes (lane-dense rows)
        dt = o_ref.dtype
        if left == 0 and right == 0:
            # Rows keep their width: interior is ONE contiguous run, borders are two
            # contiguous bands.  Every store is dense; every element written once.
            if top > 0:
                o_ref[:, pl.ds(0, top * Wo)] = jnp.zeros((TB, top * Wo), dt)
            if bottom > 0:
                o_ref[:, pl.ds((top + H) * Wo, bottom * Wo)] = jnp.zeros(
                    (TB, bottom * Wo), dt
                )
            o_ref[:, pl.ds(top * Wo, H_W)] = x_ref[...]
        else:
            # General case: one dense full-block zero store (unmasked, lane-dense),
            # then drop the H interior row-runs in at their static flat offsets.
            o_ref[...] = jnp.zeros((TB, Ho_Wo), dt)
            # TODO(synk): for very large H switch this unrolled loop to pl.loop with
            # dynamic pl.ds offsets to bound generated code size.
            for r in range(H):
                dst = (top + r) * Wo + left
                o_ref[:, pl.ds(dst, W)] = x_ref[:, pl.ds(r * W, W)]

    return pad_kernel


def custom_pad(x: jax.Array, padding) -> jax.Array:
    """Equivalent of torch.nn.functional.pad(x, padding) for a 4D NCHW tensor with a
    static, non-negative 4-element padding tuple and zero fill."""
    left, right, top, bottom = (int(p) for p in padding)
    # TODO(synk): negative padding (cropping), traced padding values, and padding
    # tuples that touch the N/C dims are not handled here.
    assert min(left, right, top, bottom) >= 0

    N, C, H, W = x.shape
    Ho, Wo = H + top + bottom, W + left + right
    P = N * C
    itemsize = jnp.dtype(x.dtype).itemsize
    subl = max(8, 32 // itemsize)  # sublane tile: 8 f32 / 16 bf16 / 32 int8

    # ---- generation-aware VMEM budget --------------------------------------
    try:
        vmem_cap = int(pltpu.get_tpu_info().vmem_capacity_bytes)
    except Exception:
        vmem_cap = 128 * 1024 * 1024
    # Scoped limit: ~64 MiB on 128-MiB parts (v5e/v6e), ~48 MiB on v7x (64 MiB VMEM).
    vmem_limit = min((vmem_cap * 3) // 4, 64 * 1024 * 1024)
    # Per-step (input tile + output tile) budget; pipeline double-buffers this.
    pair_budget = (vmem_limit // 2) * 4 // 5
    try:
        if "v5" in jax.devices()[0].device_kind.lower():
            # v5e: ~0.8 TB/s HBM -- bigger steps buy little; keep tiles modest.
            pair_budget = min(pair_budget, 12 * 1024 * 1024)
    except Exception:
        pass

    # ---- plane batching sized from the *tiled* VMEM footprint --------------
    lane_pad = lambda n: _ceil_div(n, 128) * 128
    plane_pair_bytes = (lane_pad(H * W) + lane_pad(Ho * Wo)) * itemsize
    cap_planes = max(1, pair_budget // plane_pair_bytes)
    TB = _choose_tb(P, cap_planes, subl)
    grid = (_ceil_div(P, TB),)

    xf = x.reshape(P, H * W)  # free for contiguous row-major data

    kernel = _make_pad_kernel(TB, H, W, Ho, Wo, top, bottom, left, right)

    out_flat = pl.pallas_call(
        kernel,
        out_shape=jax.ShapeDtypeStruct((P, Ho * Wo), x.dtype),
        grid=grid,
        # Last block dims equal the full (flattened) array dims, so the (8, 128)
        # constraint is satisfied; TB is sublane-aligned (or == P) by construction.
        in_specs=[pl.BlockSpec((TB, H * W), lambda i: (i, 0))],
        out_specs=pl.BlockSpec((TB, Ho * Wo), lambda i: (i, 0)),
        compiler_params=pltpu.CompilerParams(
            dimension_semantics=("parallel",),
            vmem_limit_bytes=int(vmem_limit),
        ),
        cost_estimate=pl.CostEstimate(
            flops=0,
            transcendentals=0,
            bytes_accessed=P * (H * W + Ho * Wo) * itemsize,
        ),
    )(xf)

    return out_flat.reshape(N, C, Ho, Wo)


if __name__ == "__main__":
    key = jax.random.PRNGKey(0)

    # Primary case: matches the PyTorch module usage (NCHW, 4-element padding).
    x = jax.random.normal(key, (2, 4, 16, 16), dtype=jnp.float32)
    padding = (1, 2, 3, 4)  # (left, right, top, bottom) -- like F.pad
    out = jax.block_until_ready(custom_pad(x, padding))
    l, r, t, b = padding
    ref = jnp.pad(x, ((0, 0), (0, 0), (t, b), (l, r)))
    assert out.shape == ref.shape, (out.shape, ref.shape)
    assert jnp.allclose(out, ref), "mismatch vs reference pad (case 1)"

    # Secondary case: zero left/right padding exercises the fully-dense fast path.
    x2 = jax.random.normal(jax.random.PRNGKey(1), (2, 3, 8, 128), dtype=jnp.float32)
    padding2 = (0, 0, 1, 1)
    out2 = jax.block_until_ready(custom_pad(x2, padding2))
    l2, r2, t2, b2 = padding2
    ref2 = jnp.pad(x2, ((0, 0), (0, 0), (t2, b2), (l2, r2)))
    assert out2.shape == ref2.shape, (out2.shape, ref2.shape)
    assert jnp.allclose(out2, ref2), "mismatch vs reference pad (case 2)"

    # Degenerate case: all-zero padding is just a (non-aliasing) copy kernel.
    out3 = jax.block_until_ready(custom_pad(x, (0, 0, 0, 0)))
    assert jnp.array_equal(out3, x), "mismatch vs reference pad (case 3)"

    print("KERNEL_OK")
</pallas_src>

<mosaic_0001>
module attributes {stable_mosaic.version = 11 : i64} {
  func.func @pad_kernel(%arg0: i32, %arg1: memref<8x256xf32, #tpu.memory_space<vmem>>, %arg2: memref<8x437xf32, #tpu.memory_space<vmem>>) attributes {dimension_semantics = [#tpu.dimension_semantics<parallel>], iteration_bounds = array<i64: 1>, scalar_prefetch = 0 : i64, scratch_operands = 0 : i64, tpu.core_type = #tpu.core_type<tc>, window_params = [{transform_indices = @transform_0, window_bounds = array<i64: 8, 256>}, {transform_indices = @transform_1, window_bounds = array<i64: 8, 437>}]} {
    %cst = arith.constant 0.000000e+00 : f32
    %0 = vector.broadcast %cst : f32 to vector<8x437xf32>
    %c0 = arith.constant 0 : index
    %c0_0 = arith.constant 0 : index
    %1 = vector.load %arg2[%c0, %c0_0] : memref<8x437xf32, #tpu.memory_space<vmem>>, vector<8x437xf32>
    tpu.vector_store %arg2[%c0, %c0_0], %0 {strides = array<i32>} : memref<8x437xf32, #tpu.memory_space<vmem>>, vector<8x437xf32>,
    %c0_1 = arith.constant 0 : index
    %c0_2 = arith.constant 0 : index
    %2 = vector.load %arg1[%c0_1, %c0_2] : memref<8x256xf32, #tpu.memory_space<vmem>>, vector<8x16xf32>
    %c0_3 = arith.constant 0 : index
    %c58 = arith.constant 58 : index
    %3 = vector.load %arg2[%c0_3, %c58] : memref<8x437xf32, #tpu.memory_space<vmem>>, vector<8x16xf32>
    tpu.vector_store %arg2[%c0_3, %c58], %2 {strides = array<i32>} : memref<8x437xf32, #tpu.memory_space<vmem>>, vector<8x16xf32>,
    %c0_4 = arith.constant 0 : index
    %c16 = arith.constant 16 : index
    %4 = vector.load %arg1[%c0_4, %c16] : memref<8x256xf32, #tpu.memory_space<vmem>>, vector<8x16xf32>
    %c0_5 = arith.constant 0 : index
    %c77 = arith.constant 77 : index
    %5 = vector.load %arg2[%c0_5, %c77] : memref<8x437xf32, #tpu.memory_space<vmem>>, vector<8x16xf32>
    tpu.vector_store %arg2[%c0_5, %c77], %4 {strides = array<i32>} : memref<8x437xf32, #tpu.memory_space<vmem>>, vector<8x16xf32>,
    %c0_6 = arith.constant 0 : index
    %c32 = arith.constant 32 : index
    %6 = vector.load %arg1[%c0_6, %c32] : memref<8x256xf32, #tpu.memory_space<vmem>>, vector<8x16xf32>
    %c0_7 = arith.constant 0 : index
    %c96 = arith.constant 96 : index
    %7 = vector.load %arg2[%c0_7, %c96] : memref<8x437xf32, #tpu.memory_space<vmem>>, vector<8x16xf32>
    tpu.vector_store %arg2[%c0_7, %c96], %6 {strides = array<i32>} : memref<8x437xf32, #tpu.memory_space<vmem>>, vector<8x16xf32>,
    %c0_8 = arith.constant 0 : index
    %c48 = arith.constant 48 : index
    %8 = vector.load %arg1[%c0_8, %c48] : memref<8x256xf32, #tpu.memory_space<vmem>>, vector<8x16xf32>
    %c0_9 = arith.constant 0 : index
    %c115 = arith.constant 115 : index
    %9 = vector.load %arg2[%c0_9, %c115] : memref<8x437xf32, #tpu.memory_space<vmem>>, vector<8x16xf32>
    tpu.vector_store %arg2[%c0_9, %c115], %8 {strides = array<i32>} : memref<8x437xf32, #tpu.memory_space<vmem>>, vector<8x16xf32>,
    %c0_10 = arith.constant 0 : index
    %c64 = arith.constant 64 : index
    %10 = vector.load %arg1[%c0_10, %c64] : memref<8x256xf32, #tpu.memory_space<vmem>>, vector<8x16xf32>
    %c0_11 = arith.constant 0 : index
    %c134 = arith.constant 134 : index
    %11 = vector.load %arg2[%c0_11, %c134] : memref<8x437xf32, #tpu.memory_space<vmem>>, vector<8x16xf32>
    tpu.vector_store %arg2[%c0_11, %c134], %10 {strides = array<i32>} : memref<8x437xf32, #tpu.memory_space<vmem>>, vector<8x16xf32>,
    %c0_12 = arith.constant 0 : index
    %c80 = arith.constant 80 : index
    %12 = vector.load %arg1[%c0_12, %c80] : memref<8x256xf32, #tpu.memory_space<vmem>>, vector<8x16xf32>
    %c0_13 = arith.constant 0 : index
    %c153 = arith.constant 153 : index
    %13 = vector.load %arg2[%c0_13, %c153] : memref<8x437xf32, #tpu.memory_space<vmem>>, vector<8x16xf32>
    tpu.vector_store %arg2[%c0_13, %c153], %12 {strides = array<i32>} : memref<8x437xf32, #tpu.memory_space<vmem>>, vector<8x16xf32>,
    %c0_14 = arith.constant 0 : index
    %c96_15 = arith.constant 96 : index
    %14 = vector.load %arg1[%c0_14, %c96_15] : memref<8x256xf32, #tpu.memory_space<vmem>>, vector<8x16xf32>
    %c0_16 = arith.constant 0 : index
    %c172 = arith.constant 172 : index
    %15 = vector.load %arg2[%c0_16, %c172] : memref<8x437xf32, #tpu.memory_space<vmem>>, vector<8x16xf32>
    tpu.vector_store %arg2[%c0_16, %c172], %14 {strides = array<i32>} : memref<8x437xf32, #tpu.memory_space<vmem>>, vector<8x16xf32>,
    %c0_17 = arith.constant 0 : index
    %c112 = arith.constant 112 : index
    %16 = vector.load %arg1[%c0_17, %c112] : memref<8x256xf32, #tpu.memory_space<vmem>>, vector<8x16xf32>
    %c0_18 = arith.constant 0 : index
    %c191 = arith.constant 191 : index
    %17 = vector.load %arg2[%c0_18, %c191] : memref<8x437xf32, #tpu.memory_space<vmem>>, vector<8x16xf32>
    tpu.vector_store %arg2[%c0_18, %c191], %16 {strides = array<i32>} : memref<8x437xf32, #tpu.memory_space<vmem>>, vector<8x16xf32>,
    %c0_19 = arith.constant 0 : index
    %c128 = arith.constant 128 : index
    %18 = vector.load %arg1[%c0_19, %c128] : memref<8x256xf32, #tpu.memory_space<vmem>>, vector<8x16xf32>
    %c0_20 = arith.constant 0 : index
    %c210 = arith.constant 210 : index
    %19 = vector.load %arg2[%c0_20, %c210] : memref<8x437xf32, #tpu.memory_space<vmem>>, vector<8x16xf32>
    tpu.vector_store %arg2[%c0_20, %c210], %18 {strides = array<i32>} : memref<8x437xf32, #tpu.memory_space<vmem>>, vector<8x16xf32>,
    %c0_21 = arith.constant 0 : index
    %c144 = arith.constant 144 : index
    %20 = vector.load %arg1[%c0_21, %c144] : memref<8x256xf32, #tpu.memory_space<vmem>>, vector<8x16xf32>
    %c0_22 = arith.constant 0 : index
    %c229 = arith.constant 229 : index
    %21 = vector.load %arg2[%c0_22, %c229] : memref<8x437xf32, #tpu.memory_space<vmem>>, vector<8x16xf32>
    tpu.vector_store %arg2[%c0_22, %c229], %20 {strides = array<i32>} : memref<8x437xf32, #tpu.memory_space<vmem>>, vector<8x16xf32>,
    %c0_23 = arith.constant 0 : index
    %c160 = arith.constant 160 : index
    %22 = vector.load %arg1[%c0_23, %c160] : memref<8x256xf32, #tpu.memory_space<vmem>>, vector<8x16xf32>
    %c0_24 = arith.constant 0 : index
    %c248 = arith.constant 248 : index
    %23 = vector.load %arg2[%c0_24, %c248] : memref<8x437xf32, #tpu.memory_space<vmem>>, vector<8x16xf32>
    tpu.vector_store %arg2[%c0_24, %c248], %22 {strides = array<i32>} : memref<8x437xf32, #tpu.memory_space<vmem>>, vector<8x16xf32>,
    %c0_25 = arith.constant 0 : index
    %c176 = arith.constant 176 : index
    %24 = vector.load %arg1[%c0_25, %c176] : memref<8x256xf32, #tpu.memory_space<vmem>>, vector<8x16xf32>
    %c0_26 = arith.constant 0 : index
    %c267 = arith.constant 267 : index
    %25 = vector.load %arg2[%c0_26, %c267] : memref<8x437xf32, #tpu.memory_space<vmem>>, vector<8x16xf32>
    tpu.vector_store %arg2[%c0_26, %c267], %24 {strides = array<i32>} : memref<8x437xf32, #tpu.memory_space<vmem>>, vector<8x16xf32>,
    %c0_27 = arith.constant 0 : index
    %c192 = arith.constant 192 : index
    %26 = vector.load %arg1[%c0_27, %c192] : memref<8x256xf32, #tpu.memory_space<vmem>>, vector<8x16xf32>
    %c0_28 = arith.constant 0 : index
    %c286 = arith.constant 286 : index
    %27 = vector.load %arg2[%c0_28, %c286] : memref<8x437xf32, #tpu.memory_space<vmem>>, vector<8x16xf32>
    tpu.vector_store %arg2[%c0_28, %c286], %26 {strides = array<i32>} : memref<8x437xf32, #tpu.memory_space<vmem>>, vector<8x16xf32>,
    %c0_29 = arith.constant 0 : index
    %c208 = arith.constant 208 : index
    %28 = vector.load %arg1[%c0_29, %c208] : memref<8x256xf32, #tpu.memory_space<vmem>>, vector<8x16xf32>
    %c0_30 = arith.constant 0 : index
    %c305 = arith.constant 305 : index
    %29 = vector.load %arg2[%c0_30, %c305] : memref<8x437xf32, #tpu.memory_space<vmem>>, vector<8x16xf32>
    tpu.vector_store %arg2[%c0_30, %c305], %28 {strides = array<i32>} : memref<8x437xf32, #tpu.memory_space<vmem>>, vector<8x16xf32>,
    %c0_31 = arith.constant 0 : index
    %c224 = arith.constant 224 : index
    %30 = vector.load %arg1[%c0_31, %c224] : memref<8x256xf32, #tpu.memory_space<vmem>>, vector<8x16xf32>
    %c0_32 = arith.constant 0 : index
    %c324 = arith.constant 324 : index
    %31 = vector.load %arg2[%c0_32, %c324] : memref<8x437xf32, #tpu.memory_space<vmem>>, vector<8x16xf32>
    tpu.vector_store %arg2[%c0_32, %c324], %30 {strides = array<i32>} : memref<8x437xf32, #tpu.memory_space<vmem>>, vector<8x16xf32>,
    %c0_33 = arith.constant 0 : index
    %c240 = arith.constant 240 : index
    %32 = vector.load %arg1[%c0_33, %c240] : memref<8x256xf32, #tpu.memory_space<vmem>>, vector<8x16xf32>
    %c0_34 = arith.constant 0 : index
    %c343 = arith.constant 343 : index
    %33 = vector.load %arg2[%c0_34, %c343] : memref<8x437xf32, #tpu.memory_space<vmem>>, vector<8x16xf32>
    tpu.vector_store %arg2[%c0_34, %c343], %32 {strides = array<i32>} : memref<8x437xf32, #tpu.memory_space<vmem>>, vector<8x16xf32>,
    return
  }
  func.func @transform_0(%arg0: i32) -> (i32, i32) {
    %c0_i32 = arith.constant 0 : i32
    %c0_i32_0 = arith.constant 0 : i32
    return %arg0, %c0_i32 : i32, i32
  }
  func.func @transform_1(%arg0: i32) -> (i32, i32) {
    %c0_i32 = arith.constant 0 : i32
    %c0_i32_0 = arith.constant 0 : i32
    return %arg0, %c0_i32 : i32, i32
  }
}

</mosaic_0001>

<llo_original>
// kernel: tpu_custom_call.1
$region0: #{tpu_custom_call.1}
  #allocation0 [shape = 'u32[]', space=smem, size = 0x4, offset = 0x4, fixed_abs, tag = 'smem constant byte address 0x4 - core index']
  #allocation1 [shape = 'u32[144,128]{1,0:T(1,128)}', space=vmem, size = 0x12000, scoped, tag = 'internal scratch']
  %s0 = inlined_call_operand.hbm [shape: f32[8,256], index: 0, kind: input, shape index: {}]
  %s1 = inlined_call_operand.hbm [shape: f32[8,437], index: 1, kind: output, shape index: {}]
  %s2 = sld [smem:[#allocation0]]
  $region18: #{tpu_custom_call.1} parent=0
    _
  %s4 = ssub.s32 1, %s2
  %s5 = scalar_select 0, %s4, %s2
  $region1: #{tpu_custom_call.1} parent=0
    #allocation2 [shape = 'u8[8192]{0}', space=vmem, size = 0x2000, scoped, tag = 'input window, operand 0, single buffered']
    #allocation3 [shape = 's32[1]{0}', space=sflag, size = 0x4, scoped, tag = 'scoped memory for tpu_custom_call.1']
    #allocation4 [shape = 's32[1]{0}', space=sflag, size = 0x4, scoped, tag = 'scoped memory for tpu_custom_call.1']
    #allocation5 [shape = 'u8[16384]{0}', space=vmem, size = 0x4000, scoped, tag = 'output window, operand 0, single buffered']
    %6 = vsyncpa [#allocation3], 0
    %7 = vsyncpa [#allocation4], 0
    // Predicated region
    $region2: #{tpu_custom_call.1} parent=1 // pred_check
      _
    $region3: #{tpu_custom_call.1} parent=1 // pred_check_branch
      %9 = sbr.rel (0) target = $region5
    $region4: #{tpu_custom_call.1} parent=1 // pred_region
      %s11 = ssub.s32 256, 256
      %12 = vsyncadd [#allocation3], %s11
      %s14 = sshll.u32 [#allocation2], 4
      %s15 = int_to_ptr.vmem [resolvable:$true] %s14
      %17 = dma.hbm_to_vmem [thread:$0]  %s0, 256, %s15, [#allocation3]
    $region5: #{tpu_custom_call.1} parent=1 // pred_fallthru
      _
    // Predicated region
    $region6: #{tpu_custom_call.1} parent=1 // pred_check
      _
    $region7: #{tpu_custom_call.1} parent=1 // pred_check_branch
      %19 = sbr.rel (0) target = $region9
    $region8: #{tpu_custom_call.1} parent=1 // pred_region
      %20 = dma.done [#allocation3], 256
    $region9: #{tpu_custom_call.1} parent=1 // pred_fallthru
      _
    %21 = vst [vmem:[#allocation5] sm:$0xff] 0.0
    %22 = vst [vmem:[#allocation5 + $0x8] sm:$0xff] 0.0
    %23 = vst [vmem:[#allocation5 + $0x10] sm:$0xff] 0.0
    %vm24 = vcmask 433152
    %25 = vst.msk [vmem:[#allocation5 + $0x18] sm:$0xff] %vm24, 0.0
    %v26 = vld [vmem:[#allocation2] sm:$0xff]
    %28 = vrot.lane.b32.xlu0 %v26, 58
    %v29 = vpop.permute.xlu0 %28
    %vm31 = vcmask 605648
    %32 = vst.msk [vmem:[#allocation5] sm:$0xff] %vm31, %v29
    %v33 = vld [vmem:[#allocation2] sm:$0xff]
    %35 = vrot.lane.b32.xlu0 %v33, 61
    %v36 = vpop.permute.xlu0 %35
    %vm38 = vcmask 761448
    %39 = vst.msk [vmem:[#allocation5] sm:$0xff] %vm38, %v36
    %v40 = vld [vmem:[#allocation2] sm:$0xff]
    %42 = vrot.lane.b32.xlu0 %v40, 64
    %v43 = vpop.permute.xlu0 %42
    %vm45 = vcmask 917248
    %46 = vst.msk [vmem:[#allocation5] sm:$0xff] %vm45, %v43
    %v47 = vld [vmem:[#allocation2] sm:$0xff]
    %49 = vrot.lane.b32.xlu0 %v47, 67
    %v50 = vpop.permute.xlu0 %49
    %vm52 = vcmask 1048472
    %53 = vst.msk [vmem:[#allocation5] sm:$0xff] %vm52, %v50
    %vm54 = vcmask 23552
    %55 = vst.msk [vmem:[#allocation5 + $0x8] sm:$0xff] %vm54, %v50
    %v56 = vld [vmem:[#allocation2] sm:$0xff]
    %58 = vrot.lane.b32.xlu0 %v56, 70
    %v59 = vpop.permute.xlu0 %58
    %vm61 = vcmask 179248
    %62 = vst.msk [vmem:[#allocation5 + $0x8] sm:$0xff] %vm61, %v59
    %v63 = vld [vmem:[#allocation2] sm:$0xff]
    %65 = vrot.lane.b32.xlu0 %v63, 73
    %v66 = vpop.permute.xlu0 %65
    %vm68 = vcmask 335048
    %69 = vst.msk [vmem:[#allocation5 + $0x8] sm:$0xff] %vm68, %v66
    %v70 = vld [vmem:[#allocation2] sm:$0xff]
    %72 = vrot.lane.b32.xlu0 %v70, 76
    %v73 = vpop.permute.xlu0 %72
    %vm75 = vcmask 490848
    %76 = vst.msk [vmem:[#allocation5 + $0x8] sm:$0xff] %vm75, %v73
    %v77 = vld [vmem:[#allocation2] sm:$0xff]
    %79 = vrot.lane.b32.xlu0 %v77, 79
    %v80 = vpop.permute.xlu0 %79
    %vm82 = vcmask 646648
    %83 = vst.msk [vmem:[#allocation5 + $0x8] sm:$0xff] %vm82, %v80
    %v84 = vld [vmem:[#allocation2 + $0x8] sm:$0xff]
    %86 = vrot.lane.b32.xlu0 %v84, 82
    %v87 = vpop.permute.xlu0 %86
    %vm89 = vcmask 802448
    %90 = vst.msk [vmem:[#allocation5 + $0x8] sm:$0xff] %vm89, %v87
    %v91 = vld [vmem:[#allocation2 + $0x8] sm:$0xff]
    %93 = vrot.lane.b32.xlu0 %v91, 85
    %v94 = vpop.permute.xlu0 %93
    %vm96 = vcmask 958248
    %97 = vst.msk [vmem:[#allocation5 + $0x8] sm:$0xff] %vm96, %v94
    %v98 = vld [vmem:[#allocation2 + $0x8] sm:$0xff]
    %100 = vrot.lane.b32.xlu0 %v98, 88
    %v101 = vpop.permute.xlu0 %100
    %vm103 = vcmask 1048512
    %104 = vst.msk [vmem:[#allocation5 + $0x8] sm:$0xff] %vm103, %v101
    %vm105 = vcmask 64512
    %106 = vst.msk [vmem:[#allocation5 + $0x10] sm:$0xff] %vm105, %v101
    %v107 = vld [vmem:[#allocation2 + $0x8] sm:$0xff]
    %109 = vrot.lane.b32.xlu0 %v107, 91
    %v110 = vpop.permute.xlu0 %109
    %vm112 = vcmask 220248
    %113 = vst.msk [vmem:[#allocation5 + $0x10] sm:$0xff] %vm112, %v110
    %v114 = vld [vmem:[#allocation2 + $0x8] sm:$0xff]
    %116 = vrot.lane.b32.xlu0 %v114, 94
    %v117 = vpop.permute.xlu0 %116
    %vm119 = vcmask 376048
    %120 = vst.msk [vmem:[#allocation5 + $0x10] sm:$0xff] %vm119, %v117
    %v121 = vld [vmem:[#allocation2 + $0x8] sm:$0xff]
    %123 = vrot.lane.b32.xlu0 %v121, 97
    %v124 = vpop.permute.xlu0 %123
    %vm126 = vcmask 531848
    %127 = vst.msk [vmem:[#allocation5 + $0x10] sm:$0xff] %vm126, %v124
    %v128 = vld [vmem:[#allocation2 + $0x8] sm:$0xff]
    %130 = vrot.lane.b32.xlu0 %v128, 100
    %v131 = vpop.permute.xlu0 %130
    %vm133 = vcmask 687648
    %134 = vst.msk [vmem:[#allocation5 + $0x10] sm:$0xff] %vm133, %v131
    %v135 = vld [vmem:[#allocation2 + $0x8] sm:$0xff]
    %137 = vrot.lane.b32.xlu0 %v135, 103
    %v138 = vpop.permute.xlu0 %137
    %vm140 = vcmask 843448
    %141 = vst.msk [vmem:[#allocation5 + $0x10] sm:$0xff] %vm140, %v138
    // Predicated region
    $region10: #{tpu_custom_call.1} parent=1 // pred_check
      _
    $region11: #{tpu_custom_call.1} parent=1 // pred_check_branch
      %143 = sbr.rel (0) target = $region13
    $region12: #{tpu_custom_call.1} parent=1 // pred_region
      %s145 = ssub.s32 512, 512
      %146 = vsyncadd [#allocation4], %s145
      %s148 = sshll.u32 [#allocation5], 4
      %s149 = int_to_ptr.vmem [resolvable:$true] %s148
      %151 = dma.vmem_to_hbm [thread:$0]  %s149, 512, %s1, [#allocation4]
    $region13: #{tpu_custom_call.1} parent=1 // pred_fallthru
      _
    // Predicated region
    $region14: #{tpu_custom_call.1} parent=1 // pred_check
      _
    $region15: #{tpu_custom_call.1} parent=1 // pred_check_branch
      %153 = sbr.rel (0) target = $region17
    $region16: #{tpu_custom_call.1} parent=1 // pred_region
      %154 = dma.done [#allocation4], 512
    $region17: #{tpu_custom_call.1} parent=1 // pred_fallthru
      _
    %155 = vsyncpa [#allocation3], 1
    %156 = vsyncpa [#allocation4], 1

</llo_original>
